<compile_context>
chip_gen: v6e
topology: v6e:2x2x1
jax: 0.10.0
libtpu: 0.0.40
codegen_flags: <defaults>
</compile_context>

<pallas_src>
import jax
import jax.numpy as jnp
from jax.experimental import pallas as pl
from jax.experimental.pallas import tpu as pltpu


def attention_kernel(xp_ref, wbd_ref, b_ref, cind_ref, ind_ref, o_ref):
    # xp_ref  : (Bb, S, L)   packed x block (G original batch rows per 128-lane group)
    # wbd_ref : (L, L)       block-diagonal dense weight (G copies of Wt on the diagonal)
    # b_ref   : (1, L)       dense bias tiled G times
    # cind_ref: (L, G)       context folded into a per-group indicator (col g holds context
    #                        on group g's lanes, zeros elsewhere)
    # ind_ref : (G, L)       0/1 indicator used to broadcast per-group weights back to lanes
    # o_ref   : (Bb, L)      pooled vectors, lane-dense output slab
    Bb, S, L = xp_ref.shape
    G = ind_ref.shape[0]

    x = xp_ref[...]                                              # (Bb, S, L)

    # Fused dense + tanh over all rows of the block: one lane-full (Bb*S, L) @ (L, L) MXU
    # matmul. S == 8 (one f32 sublane group) keeps the collapse reshape layout-preserving.
    x2 = x.reshape(Bb * S, L)
    a = jnp.tanh(
        jnp.dot(x2, wbd_ref[...], preferred_element_type=jnp.float32) + b_ref[...]
    )                                                            # (Bb*S, L)

    # Per-group attention logits via a (L, G) context-indicator matmul.
    logits = jnp.dot(a, cind_ref[...], preferred_element_type=jnp.float32)  # (Bb*S, G)
    logits = logits.reshape(Bb, S, G)

    # Softmax over the sequence axis (PyTorch dim=1), independently per lane group.
    m = jnp.max(logits, axis=1, keepdims=True)                   # (Bb, 1, G)
    e = jnp.exp(logits - m)
    sm = e * pl.reciprocal(jnp.sum(e, axis=1, keepdims=True), approx=False)  # (Bb, S, G)

    # Broadcast per-group weights back to the 128 lanes with a (G, L) 0/1 indicator matmul.
    sm_l = jnp.dot(
        sm.reshape(Bb * S, G), ind_ref[...], preferred_element_type=jnp.float32
    ).reshape(Bb, S, L)

    # Zero out weights where x == 0 (elementwise, matches torch.where), then renormalize.
    w = jnp.where(x != 0, sm_l, jnp.zeros_like(x))               # (Bb, S, L)
    denom = jnp.sum(w, axis=1, keepdims=True) + 0.0001           # (Bb, 1, L)
    w = w * pl.reciprocal(denom, approx=False)

    # Weighted sum over the sequence axis -> lane-dense (Bb, L) output slab.
    o_ref[...] = jnp.sum(x * w, axis=1)


def attention_forward(x, w_dense, b_dense, context, *, block_rows=None):
    """x: (B, S, H); w_dense: (H, H) PyTorch layout (out, in); b_dense: (H,); context: (H, 1)."""
    B, S, H = x.shape
    f32 = jnp.float32

    # Lane-packing factor: pack G batch rows per 128-lane group when H divides 128.
    if H < 128 and 128 % H == 0:
        G = 128 // H
    else:
        G = 1  # TODO(synk): for H not dividing 128, pad H to the next multiple of 128 instead.
    L = G * H

    B_g = pl.cdiv(B, G)                                  # packed batch rows needed
    if block_rows is None:
        if B_g <= 8:
            bp = B_g                                     # single block == full dim (tiny B)
        else:
            # Multiple of 8, at most 512 packed rows (~2 MiB x tile), and sized so the
            # "parallel" grid axis has >= 2 steps (keeps both v7x TensorCores busy).
            half = pl.cdiv(B_g, 2)
            bp = min(512, ((half + 7) // 8) * 8)
    else:
        bp = block_rows
    n_blocks = pl.cdiv(B_g, bp)
    B_g_pad = n_blocks * bp
    B_pad = B_g_pad * G

    if B_pad != B:
        # Zero-padded rows pool to exactly zero (the x != 0 mask kills them); sliced off below.
        x = jnp.pad(x, ((0, B_pad - B), (0, 0), (0, 0)))

    # Pack G batch rows per 128-lane group: (B_pad, S, H) -> (B_g_pad, S, G*H).
    xp = x.astype(f32).reshape(B_g_pad, G, S, H).transpose(0, 2, 1, 3).reshape(B_g_pad, S, L)

    # One-time wrapper-side parameter plumbing (block-diagonal weight, tiled bias, indicators).
    eye_g = jnp.eye(G, dtype=f32)
    wt = w_dense.T.astype(f32)                                   # (in, out)
    wbd = jnp.kron(eye_g, wt)                                    # (L, L) block diagonal
    b_t = jnp.tile(b_dense.astype(f32), G).reshape(1, L)         # (1, L)
    cind = (eye_g[:, None, :] * context.reshape(1, H, 1).astype(f32)).reshape(L, G)  # (L, G)
    ind = jnp.kron(eye_g, jnp.ones((1, H), f32))                 # (G, L)

    out_packed = pl.pallas_call(
        attention_kernel,
        out_shape=jax.ShapeDtypeStruct((B_g_pad, L), jnp.float32),
        grid_spec=pltpu.PrefetchScalarGridSpec(
            num_scalar_prefetch=0,
            grid=(n_blocks,),
            in_specs=[
                pl.BlockSpec((bp, S, L), lambda i: (i, 0, 0)),   # packed x, block of rows
                pl.BlockSpec((L, L), lambda i: (0, 0)),          # block-diag weight (resident)
                pl.BlockSpec((1, L), lambda i: (0, 0)),          # tiled bias
                pl.BlockSpec((L, G), lambda i: (0, 0)),          # context indicator
                pl.BlockSpec((G, L), lambda i: (0, 0)),          # 0/1 group indicator
            ],
            out_specs=pl.BlockSpec((bp, L), lambda i: (i, 0)),
        ),
        compiler_params=pltpu.CompilerParams(
            dimension_semantics=("parallel",)
        ),
    )(xp, wbd, b_t, cind, ind)

    # Unpack lane groups back to batch rows and strip padding.
    out = out_packed.reshape(B_pad, H)[:B]
    return out.reshape(B, 1, H)


def attention_reference(x, w_dense, b_dense, context):
    """Pure-JAX reference mirroring the PyTorch forward exactly."""
    a = jnp.tanh(jnp.einsum("bsh,oh->bso", x, w_dense) + b_dense)   # dense + tanh
    weights = jnp.matmul(a, context)                                # (B, S, 1)
    weights = jax.nn.softmax(weights, axis=1)
    weights = jnp.where(x != 0, weights, jnp.zeros_like(x))         # (B, S, H)
    weights = weights / (jnp.sum(weights, axis=1, keepdims=True) + 0.0001)
    return jnp.sum(x * weights, axis=1, keepdims=True)              # (B, 1, H)


if __name__ == "__main__":
    gru_size = 16
    H = 2 * gru_size          # 32
    B, S = 2, 8

    key = jax.random.PRNGKey(0)
    kx, kw, kb, kc = jax.random.split(key, 4)

    x = jax.random.normal(kx, (B, S, H), dtype=jnp.float32)
    w_dense = jax.random.normal(kw, (H, H), dtype=jnp.float32) * 0.1   # nn.Linear weight (out, in)
    b_dense = jax.random.normal(kb, (H,), dtype=jnp.float32) * 0.1     # nn.Linear bias
    context = jax.random.normal(kc, (H, 1), dtype=jnp.float32)         # nn.Parameter(2*gru, 1)

    out = attention_forward(x, w_dense, b_dense, context)
    out = jax.block_until_ready(out)

    ref = attention_reference(x, w_dense, b_dense, context)
    assert out.shape == (B, 1, H)
    assert jnp.allclose(out, ref, atol=1e-5, rtol=1e-5), "mismatch vs pure-JAX reference"

    # Also exercise the multi-block + batch-padding path (2 grid steps, packed rows).
    B2 = 40
    x2 = jax.random.normal(jax.random.PRNGKey(1), (B2, S, H), dtype=jnp.float32)
    out2 = jax.block_until_ready(attention_forward(x2, w_dense, b_dense, context))
    ref2 = attention_reference(x2, w_dense, b_dense, context)
    assert out2.shape == (B2, 1, H)
    assert jnp.allclose(out2, ref2, atol=1e-5, rtol=1e-5), "mismatch on multi-block path"

    print("KERNEL_OK")
</pallas_src>

<mosaic_0001>
module attributes {stable_mosaic.version = 11 : i64} {
  func.func @attention_kernel(%arg0: i32, %arg1: memref<1x8x128xf32, #tpu.memory_space<vmem>>, %arg2: memref<128x128xf32, #tpu.memory_space<vmem>>, %arg3: memref<1x128xf32, #tpu.memory_space<vmem>>, %arg4: memref<128x4xf32, #tpu.memory_space<vmem>>, %arg5: memref<4x128xf32, #tpu.memory_space<vmem>>, %arg6: memref<1x128xf32, #tpu.memory_space<vmem>>) attributes {dimension_semantics = [#tpu.dimension_semantics<parallel>], iteration_bounds = array<i64: 1>, scalar_prefetch = 0 : i64, scratch_operands = 0 : i64, tpu.core_type = #tpu.core_type<tc>, window_params = [{transform_indices = @transform_0, window_bounds = array<i64: 1, 8, 128>}, {pipeline_mode = #tpu.pipeline_mode<synchronous>, transform_indices = @transform_1, window_bounds = array<i64: 128, 128>}, {pipeline_mode = #tpu.pipeline_mode<synchronous>, transform_indices = @transform_2, window_bounds = array<i64: 1, 128>}, {pipeline_mode = #tpu.pipeline_mode<synchronous>, transform_indices = @transform_3, window_bounds = array<i64: 128, 4>}, {pipeline_mode = #tpu.pipeline_mode<synchronous>, transform_indices = @transform_4, window_bounds = array<i64: 4, 128>}, {transform_indices = @transform_5, window_bounds = array<i64: 1, 128>}]} {
    %c0 = arith.constant 0 : index
    %c0_0 = arith.constant 0 : index
    %c0_1 = arith.constant 0 : index
    %0 = vector.load %arg1[%c0, %c0_0, %c0_1] : memref<1x8x128xf32, #tpu.memory_space<vmem>>, vector<1x8x128xf32>
    %1 = vector.shape_cast %0 : vector<1x8x128xf32> to vector<8x128xf32>
    %c0_2 = arith.constant 0 : index
    %c0_3 = arith.constant 0 : index
    %2 = vector.load %arg2[%c0_2, %c0_3] : memref<128x128xf32, #tpu.memory_space<vmem>>, vector<128x128xf32>
    %cst = arith.constant dense<0.000000e+00> : vector<8x128xf32>
    %3 = tpu.matmul %1, %2, %cst {dimension_numbers = #tpu.dot_dimension_numbers<[1], [0], [0], [1], [0, 0, 1, 1], [], []>} : vector<8x128xf32>, vector<128x128xf32>, vector<8x128xf32> -> vector<8x128xf32>
    %c0_4 = arith.constant 0 : index
    %c0_5 = arith.constant 0 : index
    %4 = vector.load %arg3[%c0_4, %c0_5] : memref<1x128xf32, #tpu.memory_space<vmem>>, vector<1x128xf32>
    %5 = vector.broadcast %4 : vector<1x128xf32> to vector<8x128xf32>
    %6 = arith.addf %3, %5 : vector<8x128xf32>
    %7 = math.tanh %6 : vector<8x128xf32>
    %c0_6 = arith.constant 0 : index
    %c0_7 = arith.constant 0 : index
    %8 = vector.load %arg4[%c0_6, %c0_7] : memref<128x4xf32, #tpu.memory_space<vmem>>, vector<128x4xf32>
    %cst_8 = arith.constant dense<0.000000e+00> : vector<8x4xf32>
    %9 = tpu.matmul %7, %8, %cst_8 {dimension_numbers = #tpu.dot_dimension_numbers<[1], [0], [0], [1], [0, 0, 1, 1], [], []>} : vector<8x128xf32>, vector<128x4xf32>, vector<8x4xf32> -> vector<8x4xf32>
    %10 = vector.shape_cast %9 : vector<8x4xf32> to vector<1x8x4xf32>
    %cst_9 = arith.constant dense<0xFF800000> : vector<1x4xf32>
    %11 = vector.multi_reduction <maximumf>, %10, %cst_9 [1] : vector<1x8x4xf32> to vector<1x4xf32>
    %12 = vector.shape_cast %11 : vector<1x4xf32> to vector<1x1x4xf32>
    %13 = vector.broadcast %12 : vector<1x1x4xf32> to vector<1x8x4xf32>
    %14 = arith.subf %10, %13 : vector<1x8x4xf32>
    %15 = math.exp %14 : vector<1x8x4xf32>
    %cst_10 = arith.constant dense<0.000000e+00> : vector<1x4xf32>
    %16 = vector.multi_reduction <add>, %15, %cst_10 [1] : vector<1x8x4xf32> to vector<1x4xf32>
    %17 = vector.shape_cast %16 : vector<1x4xf32> to vector<1x1x4xf32>
    %18 = tpu.reciprocal %17 : vector<1x1x4xf32> -> vector<1x1x4xf32>
    %19 = vector.broadcast %18 : vector<1x1x4xf32> to vector<1x8x4xf32>
    %20 = arith.mulf %15, %19 : vector<1x8x4xf32>
    %21 = vector.shape_cast %20 : vector<1x8x4xf32> to vector<8x4xf32>
    %c0_11 = arith.constant 0 : index
    %c0_12 = arith.constant 0 : index
    %22 = vector.load %arg5[%c0_11, %c0_12] : memref<4x128xf32, #tpu.memory_space<vmem>>, vector<4x128xf32>
    %cst_13 = arith.constant dense<0.000000e+00> : vector<8x128xf32>
    %23 = tpu.matmul %21, %22, %cst_13 {dimension_numbers = #tpu.dot_dimension_numbers<[1], [0], [0], [1], [0, 0, 1, 1], [], []>} : vector<8x4xf32>, vector<4x128xf32>, vector<8x128xf32> -> vector<8x128xf32>
    %24 = vector.shape_cast %23 : vector<8x128xf32> to vector<1x8x128xf32>
    %cst_14 = arith.constant 0.000000e+00 : f32
    %25 = vector.broadcast %cst_14 : f32 to vector<1x8x128xf32>
    %26 = arith.cmpf one, %0, %25 : vector<1x8x128xf32>
    %cst_15 = arith.constant 0.000000e+00 : f32
    %27 = vector.broadcast %cst_15 : f32 to vector<1x8x128xf32>
    %28 = arith.select %26, %24, %27 : vector<1x8x128xi1>, vector<1x8x128xf32>
    %cst_16 = arith.constant dense<0.000000e+00> : vector<1x128xf32>
    %29 = vector.multi_reduction <add>, %28, %cst_16 [1] : vector<1x8x128xf32> to vector<1x128xf32>
    %30 = vector.shape_cast %29 : vector<1x128xf32> to vector<1x1x128xf32>
    %cst_17 = arith.constant 9.99999974E-5 : f32
    %31 = vector.broadcast %cst_17 : f32 to vector<1x1x128xf32>
    %32 = arith.addf %30, %31 : vector<1x1x128xf32>
    %33 = tpu.reciprocal %32 : vector<1x1x128xf32> -> vector<1x1x128xf32>
    %34 = vector.broadcast %33 : vector<1x1x128xf32> to vector<1x8x128xf32>
    %35 = arith.mulf %28, %34 : vector<1x8x128xf32>
    %36 = arith.mulf %0, %35 : vector<1x8x128xf32>
    %cst_18 = arith.constant dense<0.000000e+00> : vector<1x128xf32>
    %37 = vector.multi_reduction <add>, %36, %cst_18 [1] : vector<1x8x128xf32> to vector<1x128xf32>
    %c0_19 = arith.constant 0 : index
    %c0_20 = arith.constant 0 : index
    %38 = vector.load %arg6[%c0_19, %c0_20] : memref<1x128xf32, #tpu.memory_space<vmem>>, vector<1x128xf32>
    tpu.vector_store %arg6[%c0_19, %c0_20], %37 {strides = array<i32>} : memref<1x128xf32, #tpu.memory_space<vmem>>, vector<1x128xf32>,
    return
  }
  func.func @transform_0(%arg0: i32) -> (i32, i32, i32) {
    %c0_i32 = arith.constant 0 : i32
    %c0_i32_0 = arith.constant 0 : i32
    %c0_i32_1 = arith.constant 0 : i32
    return %arg0, %c0_i32, %c0_i32_0 : i32, i32, i32
  }
  func.func @transform_1(%arg0: i32) -> (i32, i32) {
    %c0_i32 = arith.constant 0 : i32
    %c0_i32_0 = arith.constant 0 : i32
    %c0_i32_1 = arith.constant 0 : i32
    return %c0_i32, %c0_i32_0 : i32, i32
  }
  func.func @transform_2(%arg0: i32) -> (i32, i32) {
    %c0_i32 = arith.constant 0 : i32
    %c0_i32_0 = arith.constant 0 : i32
    %c0_i32_1 = arith.constant 0 : i32
    return %c0_i32, %c0_i32_0 : i32, i32
  }
  func.func @transform_3(%arg0: i32) -> (i32, i32) {
    %c0_i32 = arith.constant 0 : i32
    %c0_i32_0 = arith.constant 0 : i32
    %c0_i32_1 = arith.constant 0 : i32
    return %c0_i32, %c0_i32_0 : i32, i32
  }
  func.func @transform_4(%arg0: i32) -> (i32, i32) {
    %c0_i32 = arith.constant 0 : i32
    %c0_i32_0 = arith.constant 0 : i32
    %c0_i32_1 = arith.constant 0 : i32
    return %c0_i32, %c0_i32_0 : i32, i32
  }
  func.func @transform_5(%arg0: i32) -> (i32, i32) {
    %c0_i32 = arith.constant 0 : i32
    %c0_i32_0 = arith.constant 0 : i32
    return %arg0, %c0_i32 : i32, i32
  }
}

</mosaic_0001>

<llo_original>
// kernel: tpu_custom_call.1
$region0: #{tpu_custom_call.1}
  #allocation0 [shape = 'u32[]', space=smem, size = 0x4, offset = 0x4, fixed_abs, tag = 'smem constant byte address 0x4 - core index']
  #allocation1 [shape = 'u32[144,128]{1,0:T(1,128)}', space=vmem, size = 0x12000, scoped, tag = 'internal scratch']
  %s0 = inlined_call_operand.hbm [shape: f32[1,8,128], index: 0, kind: input, shape index: {}]
  %s1 = inlined_call_operand.vmem [shape: f32[128,128], index: 1, kind: input, shape index: {}]
  %s2 = inlined_call_operand.vmem [shape: f32[1,128], index: 2, kind: input, shape index: {}]
  %s3 = inlined_call_operand.vmem [shape: f32[128,4], index: 3, kind: input, shape index: {}]
  %s4 = inlined_call_operand.vmem [shape: f32[4,128], index: 4, kind: input, shape index: {}]
  %s5 = inlined_call_operand.hbm [shape: f32[1,128], index: 5, kind: output, shape index: {}]
  %s6 = sld [smem:[#allocation0]]
  $region34: #{tpu_custom_call.1} parent=0
    _
  %s8 = ssub.s32 1, %s6
  %s9 = scalar_select 0, %s8, %s6
  $region1: #{tpu_custom_call.1} parent=0
    #allocation2 [shape = 'u8[4096]{0}', space=vmem, size = 0x1000, scoped, tag = 'input window, operand 0, single buffered']
    #allocation3 [shape = 's32[1]{0}', space=sflag, size = 0x4, scoped, tag = 'scoped memory for tpu_custom_call.1']
    #allocation4 [shape = 's32[1]{0}', space=sflag, size = 0x4, scoped, tag = 'scoped memory for tpu_custom_call.1']
    #allocation5 [shape = 'u8[512]{0}', space=vmem, size = 0x400, scoped, tag = 'output window, operand 0, single buffered']
    %10 = vsyncpa [#allocation3], 0
    %11 = vsyncpa [#allocation4], 0
    // Predicated region
    $region2: #{tpu_custom_call.1} parent=1 // pred_check
      _
    $region3: #{tpu_custom_call.1} parent=1 // pred_check_branch
      %13 = sbr.rel (0) target = $region5
    $region4: #{tpu_custom_call.1} parent=1 // pred_region
      %s15 = ssub.s32 128, 128
      %16 = vsyncadd [#allocation3], %s15
      %s18 = sshll.u32 [#allocation2], 4
      %s19 = int_to_ptr.vmem [resolvable:$true] %s18
      %21 = dma.hbm_to_vmem [thread:$0]  %s0, 128, %s19, [#allocation3]
    $region5: #{tpu_custom_call.1} parent=1 // pred_fallthru
      _
    // Predicated region
    $region6: #{tpu_custom_call.1} parent=1 // pred_check
      _
    $region7: #{tpu_custom_call.1} parent=1 // pred_check_branch
      %23 = sbr.rel (0) target = $region9
    $region8: #{tpu_custom_call.1} parent=1 // pred_region
      _
    $region9: #{tpu_custom_call.1} parent=1 // pred_fallthru
      _
    // Predicated region
    $region10: #{tpu_custom_call.1} parent=1 // pred_check
      _
    $region11: #{tpu_custom_call.1} parent=1 // pred_check_branch
      %25 = sbr.rel (0) target = $region13
    $region12: #{tpu_custom_call.1} parent=1 // pred_region
      _
    $region13: #{tpu_custom_call.1} parent=1 // pred_fallthru
      _
    // Predicated region
    $region14: #{tpu_custom_call.1} parent=1 // pred_check
      _
    $region15: #{tpu_custom_call.1} parent=1 // pred_check_branch
      %27 = sbr.rel (0) target = $region17
    $region16: #{tpu_custom_call.1} parent=1 // pred_region
      _
    $region17: #{tpu_custom_call.1} parent=1 // pred_fallthru
      _
    // Predicated region
    $region18: #{tpu_custom_call.1} parent=1 // pred_check
      _
    $region19: #{tpu_custom_call.1} parent=1 // pred_check_branch
      %29 = sbr.rel (0) target = $region21
    $region20: #{tpu_custom_call.1} parent=1 // pred_region
      _
    $region21: #{tpu_custom_call.1} parent=1 // pred_fallthru
      _
    // Predicated region
    $region22: #{tpu_custom_call.1} parent=1 // pred_check
      _
    $region23: #{tpu_custom_call.1} parent=1 // pred_check_branch
      %31 = sbr.rel (0) target = $region25
    $region24: #{tpu_custom_call.1} parent=1 // pred_region
      %32 = dma.done [#allocation3], 128
    $region25: #{tpu_custom_call.1} parent=1 // pred_fallthru
      _
    %v33 = vld [vmem:[#allocation2] sm:$0xff]
    %v34 = vld [vmem:[%s1] sm:$0xff]
    %v35 = vld [vmem:[%s1 + $0x8] sm:$0xff]
    %v36 = vld [vmem:[%s1 + $0x10] sm:$0xff]
    %v37 = vld [vmem:[%s1 + $0x18] sm:$0xff]
    %v38 = vld [vmem:[%s1 + $0x20] sm:$0xff]
    %v39 = vld [vmem:[%s1 + $0x28] sm:$0xff]
    %v40 = vld [vmem:[%s1 + $0x30] sm:$0xff]
    %v41 = vld [vmem:[%s1 + $0x38] sm:$0xff]
    %v42 = vld [vmem:[%s1 + $0x40] sm:$0xff]
    %v43 = vld [vmem:[%s1 + $0x48] sm:$0xff]
    %v44 = vld [vmem:[%s1 + $0x50] sm:$0xff]
    %v45 = vld [vmem:[%s1 + $0x58] sm:$0xff]
    %v46 = vld [vmem:[%s1 + $0x60] sm:$0xff]
    %v47 = vld [vmem:[%s1 + $0x68] sm:$0xff]
    %v48 = vld [vmem:[%s1 + $0x70] sm:$0xff]
    %v49 = vld [vmem:[%s1 + $0x78] sm:$0xff]
    %v50 = vld [vmem:[%s2] sm:$0x1]
    %v52 = vlaneseq
    %v53 = vshrl.u32 %v52, 7
    %v54 = vsub.s32 0, %v53
    %v55 = vrot.slane %v50, %v54
    %57 = vmatprep.subr.mxu0 0.0
    %58 = vmatpush1.msra.mxu0 %v49
    %59 = vmatprep.subr.mxu0 0.0
    %60 = vmatpush1.msra.mxu0 %v48
    %61 = vmatprep.subr.mxu0 0.0
    %62 = vmatpush1.msra.mxu0 %v47
    %63 = vmatprep.subr.mxu0 0.0
    %64 = vmatpush1.msra.mxu0 %v46
    %65 = vmatprep.subr.mxu0 0.0
    %66 = vmatpush1.msra.mxu0 %v45
    %67 = vmatprep.subr.mxu0 0.0
    %68 = vmatpush1.msra.mxu0 %v44
    %69 = vmatprep.subr.mxu0 0.0
    %70 = vmatpush1.msra.mxu0 %v43
    %71 = vmatprep.subr.mxu0 0.0
    %72 = vmatpush1.msra.mxu0 %v42
    %73 = vmatprep.subr.mxu0 0.0
    %74 = vmatpush1.msra.mxu0 %v41
    %75 = vmatprep.subr.mxu0 0.0
    %76 = vmatpush1.msra.mxu0 %v40
    %77 = vmatprep.subr.mxu0 0.0
    %78 = vmatpush1.msra.mxu0 %v39
    %79 = vmatprep.subr.mxu0 0.0
    %80 = vmatpush1.msra.mxu0 %v38
    %81 = vmatprep.subr.mxu0 0.0
    %82 = vmatpush1.msra.mxu0 %v37
    %83 = vmatprep.subr.mxu0 0.0
    %84 = vmatpush1.msra.mxu0 %v36
    %85 = vmatprep.subr.mxu0 0.0
    %86 = vmatpush1.msra.mxu0 %v35
    %87 = vmatprep.subr.mxu0 0.0
    %88 = vmatpush1.msra.mxu0 %v34
    %89 = vmatprep.subr.mxu0 0.0
    %90 = vmatpush2.msra.mxu0 0.0
    %91 = vmatprep.subr.mxu0 0.0
    %92 = vmatpush2.msra.mxu0 0.0
    %93 = vmatprep.subr.mxu0 0.0
    %94 = vmatpush2.msra.mxu0 0.0
    %95 = vmatprep.subr.mxu0 0.0
    %96 = vmatpush2.msra.mxu0 0.0
    %97 = vmatprep.subr.mxu0 0.0
    %98 = vmatpush2.msra.mxu0 0.0
    %99 = vmatprep.subr.mxu0 0.0
    %100 = vmatpush2.msra.mxu0 0.0
    %101 = vmatprep.subr.mxu0 0.0
    %102 = vmatpush2.msra.mxu0 0.0
    %103 = vmatprep.subr.mxu0 0.0
    %104 = vmatpush2.msra.mxu0 0.0
    %105 = vmatprep.subr.mxu0 0.0
    %106 = vmatpush2.msra.mxu0 0.0
    %107 = vmatprep.subr.mxu0 0.0
    %108 = vmatpush2.msra.mxu0 0.0
    %109 = vmatprep.subr.mxu0 0.0
    %110 = vmatpush2.msra.mxu0 0.0
    %111 = vmatprep.subr.mxu0 0.0
    %112 = vmatpush2.msra.mxu0 0.0
    %113 = vmatprep.subr.mxu0 0.0
    %114 = vmatpush2.msra.mxu0 0.0
    %115 = vmatprep.subr.mxu0 0.0
    %116 = vmatpush2.msra.mxu0 0.0
    %117 = vmatprep.subr.mxu0 0.0
    %118 = vmatpush2.msra.mxu0 0.0
    %119 = vmatprep.subr.mxu0 0.0
    %120 = vmatpush2.msra.mxu0 0.0
    %121 = vmatprep.mubr.f32.mxu0 0.0
    %122 = vmatmul.mubr.f32.gmra.mxu0 %v33
    %v123 = vpop.f32.mrf.mxu0
    %v124 = vadd.f32 %v55, %v123
    %v125 = vpop.f32.mrf.mxu0
    %126 = vdwg.mxu0
    %v127 = vtanh.pop %v124
    %v128 = vld [vmem:[%s3] sm:$0xff]
    %v129 = vld [vmem:[%s3 + $0x8] sm:$0xff]
    %v130 = vld [vmem:[%s3 + $0x10] sm:$0xff]
    %v131 = vld [vmem:[%s3 + $0x18] sm:$0xff]
    %v132 = vld [vmem:[%s3 + $0x20] sm:$0xff]
    %v133 = vld [vmem:[%s3 + $0x28] sm:$0xff]
    %v134 = vld [vmem:[%s3 + $0x30] sm:$0xff]
    %v135 = vld [vmem:[%s3 + $0x38] sm:$0xff]
    %v136 = vld [vmem:[%s3 + $0x40] sm:$0xff]
    %v137 = vld [vmem:[%s3 + $0x48] sm:$0xff]
    %v138 = vld [vmem:[%s3 + $0x50] sm:$0xff]
    %v139 = vld [vmem:[%s3 + $0x58] sm:$0xff]
    %v140 = vld [vmem:[%s3 + $0x60] sm:$0xff]
    %v141 = vld [vmem:[%s3 + $0x68] sm:$0xff]
    %v142 = vld [vmem:[%s3 + $0x70] sm:$0xff]
    %v143 = vld [vmem:[%s3 + $0x78] sm:$0xff]
    %144 = vmatprep.subr.mxu0 0.0
    %145 = vmatpush1.msra.mxu0 %v143
    %146 = vmatprep.subr.mxu0 0.0
    %147 = vmatpush1.msra.mxu0 %v142
    %148 = vmatprep.subr.mxu0 0.0
    %149 = vmatpush1.msra.mxu0 %v141
    %150 = vmatprep.subr.mxu0 0.0
    %151 = vmatpush1.msra.mxu0 %v140
    %152 = vmatprep.subr.mxu0 0.0
    %153 = vmatpush1.msra.mxu0 %v139
    %154 = vmatprep.subr.mxu0 0.0
    %155 = vmatpush1.msra.mxu0 %v138
    %156 = vmatprep.subr.mxu0 0.0
    %157 = vmatpush1.msra.mxu0 %v137
    %158 = vmatprep.subr.mxu0 0.0
    %159 = vmatpush1.msra.mxu0 %v136
    %160 = vmatprep.subr.mxu0 0.0
    %161 = vmatpush1.msra.mxu0 %v135
    %162 = vmatprep.subr.mxu0 0.0
    %163 = vmatpush1.msra.mxu0 %v134
    %164 = vmatprep.subr.mxu0 0.0
    %165 = vmatpush1.msra.mxu0 %v133
    %166 = vmatprep.subr.mxu0 0.0
    %167 = vmatpush1.msra.mxu0 %v132
    %168 = vmatprep.subr.mxu0 0.0
    %169 = vmatpush1.msra.mxu0 %v131
    %170 = vmatprep.subr.mxu0 0.0
    %171 = vmatpush1.msra.mxu0 %v130
    %172 = vmatprep.subr.mxu0 0.0
    %173 = vmatpush1.msra.mxu0 %v129
    %174 = vmatprep.subr.mxu0 0.0
    %175 = vmatpush1.msra.mxu0 %v128
    %176 = vmatprep.subr.mxu0 0.0
    %177 = vmatpush2.msra.mxu0 0.0
    %178 = vmatprep.subr.mxu0 0.0
    %179 = vmatpush2.msra.mxu0 0.0
    %180 = vmatprep.subr.mxu0 0.0
    %181 = vmatpush2.msra.mxu0 0.0
    %182 = vmatprep.subr.mxu0 0.0
    %183 = vmatpush2.msra.mxu0 0.0
    %184 = vmatprep.subr.mxu0 0.0
    %185 = vmatpush2.msra.mxu0 0.0
    %186 = vmatprep.subr.mxu0 0.0
    %187 = vmatpush2.msra.mxu0 0.0
    %188 = vmatprep.subr.mxu0 0.0
    %189 = vmatpush2.msra.mxu0 0.0
    %190 = vmatprep.subr.mxu0 0.0
    %191 = vmatpush2.msra.mxu0 0.0
    %192 = vmatprep.subr.mxu0 0.0
    %193 = vmatpush2.msra.mxu0 0.0
    %194 = vmatprep.subr.mxu0 0.0
    %195 = vmatpush2.msra.mxu0 0.0
    %196 = vmatprep.subr.mxu0 0.0
    %197 = vmatpush2.msra.mxu0 0.0
    %198 = vmatprep.subr.mxu0 0.0
    %199 = vmatpush2.msra.mxu0 0.0
    %200 = vmatprep.subr.mxu0 0.0
    %201 = vmatpush2.msra.mxu0 0.0
    %202 = vmatprep.subr.mxu0 0.0
    %203 = vmatpush2.msra.mxu0 0.0
    %204 = vmatprep.subr.mxu0 0.0
    %205 = vmatpush2.msra.mxu0 0.0
    %206 = vmatprep.subr.mxu0 0.0
    %207 = vmatpush2.msra.mxu0 0.0
    %208 = vmatprep.mubr.f32.mxu0 0.0
    %209 = vmatmul.mubr.f32.gmra.mxu0 %v127
    %v210 = vpop.f32.mrf.mxu0
    %v211 = vadd.f32 0.0, %v210
    %v212 = vpop.f32.mrf.mxu0
    %213 = vdwg.mxu0
    %vm214 = vcmask 31744
    %v215 = vsel %vm214, %v211, -inf
    %v216 = vrot.slane %v215, 4
    %v217 = vmax.f32 %v215, %v216
    %v218 = vrot.slane %v217, 2
    %v219 = vmax.f32 %v217, %v218
    %v220 = vrot.slane %v219, 1
    %v221 = vmax.f32 %v219, %v220
    %v222 = vsub.f32 %v211, %v221
    %v223 = vmul.f32 %v222, 1.442695
    %v224 = vpow.pop %v223
    %v225 = vsel %vm214, %v224, 0.0
    %v226 = vrot.slane %v225, 4
    %v227 = vadd.f32 %v225, %v226
    %v228 = vrot.slane %v227, 2
    %v229 = vadd.f32 %v227, %v228
    %v230 = vrot.slane %v229, 1
    %v231 = vadd.f32 %v229, %v230
    %v232 = vrcp.pop %v231
    %v233 = vmul.f32 %v224, %v232
    %v234 = vld [vmem:[%s4] sm:$0xf]
    %v236 = vsel %vm214, %v233, 0
    %vm238 = vcmask 1043456
    %v240 = vsel %vm238, %v234, 0
    %242 = vmatprep.subr.mxu0 0.0
    %243 = vmatpush1.msra.mxu0 0.0
    %244 = vmatprep.subr.mxu0 0.0
    %245 = vmatpush1.msra.mxu0 0.0
    %246 = vmatprep.subr.mxu0 0.0
    %247 = vmatpush1.msra.mxu0 0.0
    %248 = vmatprep.subr.mxu0 0.0
    %249 = vmatpush1.msra.mxu0 0.0
    %250 = vmatprep.subr.mxu0 0.0
    %251 = vmatpush1.msra.mxu0 0.0
    %252 = vmatprep.subr.mxu0 0.0
    %253 = vmatpush1.msra.mxu0 0.0
    %254 = vmatprep.subr.mxu0 0.0
    %255 = vmatpush1.msra.mxu0 0.0
    %256 = vmatprep.subr.mxu0 0.0
    %257 = vmatpush1.msra.mxu0 0.0
    %258 = vmatprep.subr.mxu0 0.0
    %259 = vmatpush1.msra.mxu0 0.0
    %260 = vmatprep.subr.mxu0 0.0
    %261 = vmatpush1.msra.mxu0 0.0
    %262 = vmatprep.subr.mxu0 0.0
    %263 = vmatpush1.msra.mxu0 0.0
    %264 = vmatprep.subr.mxu0 0.0
    %265 = vmatpush1.msra.mxu0 0.0
    %266 = vmatprep.subr.mxu0 0.0
    %267 = vmatpush1.msra.mxu0 0.0
    %268 = vmatprep.subr.mxu0 0.0
    %269 = vmatpush1.msra.mxu0 0.0
    %270 = vmatprep.subr.mxu0 0.0
    %271 = vmatpush1.msra.mxu0 0.0
    %272 = vmatprep.subr.mxu0 0.0
    %273 = vmatpush1.msra.mxu0 %v240
    %274 = vmatprep.subr.mxu0 0.0
    %275 = vmatpush2.msra.mxu0 0.0
    %276 = vmatprep.subr.mxu0 0.0
    %277 = vmatpush2.msra.mxu0 0.0
    %278 = vmatprep.subr.mxu0 0.0
    %279 = vmatpush2.msra.mxu0 0.0
    %280 = vmatprep.subr.mxu0 0.0
    %281 = vmatpush2.msra.mxu0 0.0
    %282 = vmatprep.subr.mxu0 0.0
    %283 = vmatpush2.msra.mxu0 0.0
    %284 = vmatprep.subr.mxu0 0.0
    %285 = vmatpush2.msra.mxu0 0.0
    %286 = vmatprep.subr.mxu0 0.0
    %287 = vmatpush2.msra.mxu0 0.0
    %288 = vmatprep.subr.mxu0 0.0
    %289 = vmatpush2.msra.mxu0 0.0
    %290 = vmatprep.subr.mxu0 0.0
    %291 = vmatpush2.msra.mxu0 0.0
    %292 = vmatprep.subr.mxu0 0.0
    %293 = vmatpush2.msra.mxu0 0.0
    %294 = vmatprep.subr.mxu0 0.0
    %295 = vmatpush2.msra.mxu0 0.0
    %296 = vmatprep.subr.mxu0 0.0
    %297 = vmatpush2.msra.mxu0 0.0
    %298 = vmatprep.subr.mxu0 0.0
    %299 = vmatpush2.msra.mxu0 0.0
    %300 = vmatprep.subr.mxu0 0.0
    %301 = vmatpush2.msra.mxu0 0.0
    %302 = vmatprep.subr.mxu0 0.0
    %303 = vmatpush2.msra.mxu0 0.0
    %304 = vmatprep.subr.mxu0 0.0
    %305 = vmatpush2.msra.mxu0 0.0
    %306 = vmatprep.mubr.f32.mxu0 0.0
    %307 = vmatmul.mubr.f32.gmra.mxu0 %v236
    %v308 = vpop.f32.mrf.mxu0
    %v309 = vadd.f32 0.0, %v308
    %v310 = vpop.f32.mrf.mxu0
    %311 = vdwg.mxu0
    %vm312 = vcmp.ne.f32.partialorder %v33, 0.0
    %v313 = vsel %vm312, %v309, 0.0
    %v314 = vrot.slane %v313, 4
    %v315 = vadd.f32 %v313, %v314
    %v316 = vrot.slane %v315, 2
    %v317 = vadd.f32 %v315, %v316
    %v318 = vrot.slane %v317, 1
    %v319 = vadd.f32 %v317, %v318
    %v320 = vadd.f32 %v319, 0.0001
    %v321 = vrcp.pop %v320
    %v322 = vmul.f32 %v313, %v321
    %v323 = vmul.f32 %v33, %v322
    %v324 = vrot.slane %v323, 4
    %v325 = vadd.f32 %v323, %v324
    %v326 = vrot.slane %v325, 2
    %v327 = vadd.f32 %v325, %v326
    %v328 = vrot.slane %v327, 1
    %v329 = vadd.f32 %v327, %v328
    %330 = vst [vmem:[#allocation5] sm:$0x1] %v329
    // Predicated region
    $region26: #{tpu_custom_call.1} parent=1 // pred_check
      _
    $region27: #{tpu_custom_call.1} parent=1 // pred_check_branch
      %332 = sbr.rel (0) target = $region29
    $region28: #{tpu_custom_call.1} parent=1 // pred_region
      %s334 = ssub.s32 16, 16
      %335 = vsyncadd [#allocation4], %s334
      %s337 = sshll.u32 [#allocation5], 4
      %s338 = int_to_ptr.vmem [resolvable:$true] %s337
      %340 = dma.vmem_to_hbm [thread:$0]  %s338, 16, %s5, [#allocation4]
    $region29: #{tpu_custom_call.1} parent=1 // pred_fallthru
      _
    // Predicated region
    $region30: #{tpu_custom_call.1} parent=1 // pred_check
      _
    $region31: #{tpu_custom_call.1} parent=1 // pred_check_branch
      %342 = sbr.rel (0) target = $region33
    $region32: #{tpu_custom_call.1} parent=1 // pred_region
      %343 = dma.done [#allocation4], 16
    $region33: #{tpu_custom_call.1} parent=1 // pred_fallthru
      _
    %344 = vsyncpa [#allocation3], 1
    %345 = vsyncpa [#allocation4], 1

</llo_original>
